<compile_context>
chip_gen: v6e
topology: v6e:2x2x1
jax: 0.10.0
libtpu: 0.0.40
codegen_flags: <defaults>
</compile_context>

<pallas_src>
import numpy as np
import jax
import jax.numpy as jnp
from jax.experimental import pallas as pl
from jax.experimental.pallas import tpu as pltpu


# ------------------------------- CMD kernel ----------------------------------
def make_cmd_kernel(n_moments: int, n1: int, n2: int, num_d_tiles: int):
    assert n_moments >= 1
    inv_n1 = 1.0 / n1            # compile-time constants
    inv_n2 = 1.0 / n2

    def cmd_kernel(x1_ref, x2_ref, out_ref, acc_ref):
        j = pl.program_id(0)

        @pl.when(j == 0)
        def _():
            acc_ref[...] = jnp.zeros_like(acc_ref)

        # Upcast right after the (possibly bf16) load; compute in f32.
        x1 = x1_ref[...].astype(jnp.float32)          # (N1, d_tile)
        x2 = x2_ref[...].astype(jnp.float32)          # (N2, d_tile)

        # First moments of this D-slice (XLU sublane reduce + 1/N scale).
        mx1 = jnp.sum(x1, axis=0, keepdims=True) * inv_n1    # (1, d_tile)
        mx2 = jnp.sum(x2, axis=0, keepdims=True) * inv_n2
        sx1 = x1 - mx1
        sx2 = x2 - mx2

        # Per-moment (1, d_tile) difference rows; powers built incrementally.
        diffs = [mx1 - mx2]
        p1, p2 = sx1, sx2
        for _ in range(n_moments - 1):                # unrolled at trace time
            p1 = p1 * sx1
            p2 = p2 * sx2
            diffs.append(jnp.sum(p1, axis=0, keepdims=True) * inv_n1
                         - jnp.sum(p2, axis=0, keepdims=True) * inv_n2)

        # One batched lane reduce for all moments of this tile.
        stack = jnp.concatenate(diffs, axis=0)                       # (n_moments, d_tile)
        acc_ref[...] += jnp.sum(stack * stack, axis=-1, keepdims=True)  # (n_moments, 1)

        # Finalize once all D tiles have been accumulated:
        # one vectorized sqrt + one sublane reduce -> scalar.
        @pl.when(j == num_d_tiles - 1)
        def _():
            out_ref[...] = jnp.sum(jnp.sqrt(acc_ref[...]), axis=0, keepdims=True)

    return cmd_kernel


def _choose_d_tile(D: int, n1: int, n2: int, itemsize: int) -> int:
    """Largest D tile that (a) satisfies the lane constraint and (b) keeps
    2 inputs x 2 pipeline buffers under ~8 MiB (safe for v5e/v6e/v7x)."""
    if D % 128 != 0:
        return D                      # must take the full extent (lane rule)
    budget = 8 << 20
    per_col = 2 * (n1 + n2) * itemsize      # bytes per D column, double-buffered
    best = 128
    t = 128
    while t <= D:
        if D % t == 0 and t * per_col <= budget:
            best = t
        t += 128
    return best


def cmd_forward(x1, x2, n_moments: int, d_tile: int | None = None):
    """CMD(x1, x2, n_moments) -> scalar, via one fused Pallas TPU kernel."""
    x1 = jnp.asarray(x1)
    x2 = jnp.asarray(x2)
    assert x1.ndim == 2 and x2.ndim == 2 and x1.shape[1] == x2.shape[1]
    n1, D = x1.shape
    n2, _ = x2.shape
    itemsize = max(x1.dtype.itemsize, x2.dtype.itemsize)

    if d_tile is None:
        d_tile = _choose_d_tile(D, n1, n2, itemsize)
    assert D % d_tile == 0 and (d_tile % 128 == 0 or d_tile == D)
    num_d_tiles = D // d_tile

    # 2 pipeline buffers per input + tiny scratch/output + margin.
    inflight = 2 * (n1 + n2) * d_tile * itemsize
    vmem_limit = int(min(max(2 * inflight + (4 << 20), 16 << 20), 48 << 20))

    grid_spec = pltpu.PrefetchScalarGridSpec(
        num_scalar_prefetch=0,
        grid=(num_d_tiles,),
        in_specs=[pl.BlockSpec((n1, d_tile), lambda j: (0, j)),
                  pl.BlockSpec((n2, d_tile), lambda j: (0, j))],
        out_specs=pl.BlockSpec((1, 1), lambda j: (0, 0)),
        scratch_shapes=[pltpu.VMEM((n_moments, 1), jnp.float32)],
    )

    cost = pl.CostEstimate(
        flops=int(3 * n_moments * (n1 + n2) * D),
        transcendentals=int(n_moments),
        bytes_accessed=int((n1 + n2) * D * itemsize + 4),
    )

    out = pl.pallas_call(
        make_cmd_kernel(n_moments, n1, n2, num_d_tiles),
        out_shape=jax.ShapeDtypeStruct((1, 1), jnp.float32),
        grid_spec=grid_spec,
        compiler_params=pltpu.CompilerParams(
            dimension_semantics=("arbitrary",),   # accumulator carried over D tiles
            vmem_limit_bytes=vmem_limit,
        ),
        cost_estimate=cost,
    )(x1, x2)
    return out[0, 0]


# --------------------------- Pure-JAX reference -------------------------------
def cmd_reference(x1, x2, n_moments: int):
    x1 = jnp.asarray(x1, jnp.float32)
    x2 = jnp.asarray(x2, jnp.float32)
    mx1 = jnp.mean(x1, axis=0)
    mx2 = jnp.mean(x2, axis=0)
    sx1 = x1 - mx1
    sx2 = x2 - mx2

    def matchnorm(a, b):
        return jnp.sqrt(jnp.sum((a - b) ** 2))

    scms = matchnorm(mx1, mx2)
    for i in range(n_moments - 1):
        k = i + 2
        ss1 = jnp.mean(sx1 ** k, axis=0)
        ss2 = jnp.mean(sx2 ** k, axis=0)
        scms = scms + matchnorm(ss1, ss2)
    return scms


# ------------------------------------ main ------------------------------------
if __name__ == "__main__":
    key = jax.random.PRNGKey(0)
    k1, k2, k3, k4 = jax.random.split(key, 4)
    n_moments = 5

    # Small case (single D tile) — shapes consistent with CMD's typical use:
    # two batches of hidden representations sharing a feature dim.
    N1, N2, D = 16, 8, 128
    x1 = jax.random.normal(k1, (N1, D), jnp.float32)
    x2 = 0.5 * jax.random.normal(k2, (N2, D), jnp.float32) + 0.1
    res = cmd_forward(x1, x2, n_moments)
    jax.block_until_ready(res)
    ref = cmd_reference(x1, x2, n_moments)
    np.testing.assert_allclose(np.asarray(res), np.asarray(ref),
                               rtol=1e-4, atol=1e-5)

    # Multi-tile case exercising the D-tiled reduction grid + accumulator.
    D2 = 512
    y1 = jax.random.normal(k3, (N1, D2), jnp.float32)
    y2 = 0.5 * jax.random.normal(k4, (N2, D2), jnp.float32) - 0.2
    res2 = cmd_forward(y1, y2, n_moments, d_tile=128)
    jax.block_until_ready(res2)
    ref2 = cmd_reference(y1, y2, n_moments)
    np.testing.assert_allclose(np.asarray(res2), np.asarray(ref2),
                               rtol=1e-4, atol=1e-5)

    print("KERNEL_OK")
</pallas_src>

<mosaic_0001>
module attributes {stable_mosaic.version = 11 : i64} {
  func.func @cmd_kernel(%arg0: i32, %arg1: memref<16x128xf32, #tpu.memory_space<vmem>>, %arg2: memref<8x128xf32, #tpu.memory_space<vmem>>, %arg3: memref<1x1xf32, #tpu.memory_space<vmem>>, %arg4: memref<5x1xf32, #tpu.memory_space<vmem>>) attributes {dimension_semantics = [#tpu.dimension_semantics<arbitrary>], iteration_bounds = array<i64: 1>, scalar_prefetch = 0 : i64, scratch_operands = 1 : i64, tpu.core_type = #tpu.core_type<tc>, window_params = [{transform_indices = @transform_0, window_bounds = array<i64: 16, 128>}, {transform_indices = @transform_1, window_bounds = array<i64: 8, 128>}, {pipeline_mode = #tpu.pipeline_mode<synchronous>, transform_indices = @transform_2, window_bounds = array<i64: 1, 1>}]} {
    %c0_i32 = arith.constant 0 : i32
    %0 = arith.cmpi eq, %arg0, %c0_i32 : i32
    %1 = arith.extui %0 : i1 to i32
    %c0_i32_0 = arith.constant 0 : i32
    %2 = arith.cmpi ne, %1, %c0_i32_0 : i32
    scf.if %2 {
      %cst_30 = arith.constant 0.000000e+00 : f32
      %72 = vector.broadcast %cst_30 : f32 to vector<5x1xf32>
      %c0_31 = arith.constant 0 : index
      %c0_32 = arith.constant 0 : index
      %73 = vector.load %arg4[%c0_31, %c0_32] : memref<5x1xf32, #tpu.memory_space<vmem>>, vector<5x1xf32>
      tpu.vector_store %arg4[%c0_31, %c0_32], %72 {strides = array<i32>} : memref<5x1xf32, #tpu.memory_space<vmem>>, vector<5x1xf32>,
    } else {
    }
    %c0 = arith.constant 0 : index
    %c0_1 = arith.constant 0 : index
    %3 = vector.load %arg1[%c0, %c0_1] : memref<16x128xf32, #tpu.memory_space<vmem>>, vector<16x128xf32>
    %c0_2 = arith.constant 0 : index
    %c0_3 = arith.constant 0 : index
    %4 = vector.load %arg2[%c0_2, %c0_3] : memref<8x128xf32, #tpu.memory_space<vmem>>, vector<8x128xf32>
    %cst = arith.constant dense<0.000000e+00> : vector<128xf32>
    %5 = vector.multi_reduction <add>, %3, %cst [0] : vector<16x128xf32> to vector<128xf32>
    %6 = vector.shape_cast %5 : vector<128xf32> to vector<1x128xf32>
    %cst_4 = arith.constant 6.250000e-02 : f32
    %7 = vector.broadcast %cst_4 : f32 to vector<1x128xf32>
    %8 = arith.mulf %6, %7 : vector<1x128xf32>
    %cst_5 = arith.constant dense<0.000000e+00> : vector<128xf32>
    %9 = vector.multi_reduction <add>, %4, %cst_5 [0] : vector<8x128xf32> to vector<128xf32>
    %10 = vector.shape_cast %9 : vector<128xf32> to vector<1x128xf32>
    %cst_6 = arith.constant 1.250000e-01 : f32
    %11 = vector.broadcast %cst_6 : f32 to vector<1x128xf32>
    %12 = arith.mulf %10, %11 : vector<1x128xf32>
    %13 = vector.broadcast %8 : vector<1x128xf32> to vector<16x128xf32>
    %14 = arith.subf %3, %13 : vector<16x128xf32>
    %15 = vector.broadcast %12 : vector<1x128xf32> to vector<8x128xf32>
    %16 = arith.subf %4, %15 : vector<8x128xf32>
    %17 = arith.subf %8, %12 : vector<1x128xf32>
    %18 = arith.mulf %14, %14 : vector<16x128xf32>
    %19 = arith.mulf %16, %16 : vector<8x128xf32>
    %cst_7 = arith.constant dense<0.000000e+00> : vector<128xf32>
    %20 = vector.multi_reduction <add>, %18, %cst_7 [0] : vector<16x128xf32> to vector<128xf32>
    %21 = vector.shape_cast %20 : vector<128xf32> to vector<1x128xf32>
    %cst_8 = arith.constant 6.250000e-02 : f32
    %22 = vector.broadcast %cst_8 : f32 to vector<1x128xf32>
    %23 = arith.mulf %21, %22 : vector<1x128xf32>
    %cst_9 = arith.constant dense<0.000000e+00> : vector<128xf32>
    %24 = vector.multi_reduction <add>, %19, %cst_9 [0] : vector<8x128xf32> to vector<128xf32>
    %25 = vector.shape_cast %24 : vector<128xf32> to vector<1x128xf32>
    %cst_10 = arith.constant 1.250000e-01 : f32
    %26 = vector.broadcast %cst_10 : f32 to vector<1x128xf32>
    %27 = arith.mulf %25, %26 : vector<1x128xf32>
    %28 = arith.subf %23, %27 : vector<1x128xf32>
    %29 = arith.mulf %18, %14 : vector<16x128xf32>
    %30 = arith.mulf %19, %16 : vector<8x128xf32>
    %cst_11 = arith.constant dense<0.000000e+00> : vector<128xf32>
    %31 = vector.multi_reduction <add>, %29, %cst_11 [0] : vector<16x128xf32> to vector<128xf32>
    %32 = vector.shape_cast %31 : vector<128xf32> to vector<1x128xf32>
    %cst_12 = arith.constant 6.250000e-02 : f32
    %33 = vector.broadcast %cst_12 : f32 to vector<1x128xf32>
    %34 = arith.mulf %32, %33 : vector<1x128xf32>
    %cst_13 = arith.constant dense<0.000000e+00> : vector<128xf32>
    %35 = vector.multi_reduction <add>, %30, %cst_13 [0] : vector<8x128xf32> to vector<128xf32>
    %36 = vector.shape_cast %35 : vector<128xf32> to vector<1x128xf32>
    %cst_14 = arith.constant 1.250000e-01 : f32
    %37 = vector.broadcast %cst_14 : f32 to vector<1x128xf32>
    %38 = arith.mulf %36, %37 : vector<1x128xf32>
    %39 = arith.subf %34, %38 : vector<1x128xf32>
    %40 = arith.mulf %29, %14 : vector<16x128xf32>
    %41 = arith.mulf %30, %16 : vector<8x128xf32>
    %cst_15 = arith.constant dense<0.000000e+00> : vector<128xf32>
    %42 = vector.multi_reduction <add>, %40, %cst_15 [0] : vector<16x128xf32> to vector<128xf32>
    %43 = vector.shape_cast %42 : vector<128xf32> to vector<1x128xf32>
    %cst_16 = arith.constant 6.250000e-02 : f32
    %44 = vector.broadcast %cst_16 : f32 to vector<1x128xf32>
    %45 = arith.mulf %43, %44 : vector<1x128xf32>
    %cst_17 = arith.constant dense<0.000000e+00> : vector<128xf32>
    %46 = vector.multi_reduction <add>, %41, %cst_17 [0] : vector<8x128xf32> to vector<128xf32>
    %47 = vector.shape_cast %46 : vector<128xf32> to vector<1x128xf32>
    %cst_18 = arith.constant 1.250000e-01 : f32
    %48 = vector.broadcast %cst_18 : f32 to vector<1x128xf32>
    %49 = arith.mulf %47, %48 : vector<1x128xf32>
    %50 = arith.subf %45, %49 : vector<1x128xf32>
    %51 = arith.mulf %40, %14 : vector<16x128xf32>
    %52 = arith.mulf %41, %16 : vector<8x128xf32>
    %cst_19 = arith.constant dense<0.000000e+00> : vector<128xf32>
    %53 = vector.multi_reduction <add>, %51, %cst_19 [0] : vector<16x128xf32> to vector<128xf32>
    %54 = vector.shape_cast %53 : vector<128xf32> to vector<1x128xf32>
    %cst_20 = arith.constant 6.250000e-02 : f32
    %55 = vector.broadcast %cst_20 : f32 to vector<1x128xf32>
    %56 = arith.mulf %54, %55 : vector<1x128xf32>
    %cst_21 = arith.constant dense<0.000000e+00> : vector<128xf32>
    %57 = vector.multi_reduction <add>, %52, %cst_21 [0] : vector<8x128xf32> to vector<128xf32>
    %58 = vector.shape_cast %57 : vector<128xf32> to vector<1x128xf32>
    %cst_22 = arith.constant 1.250000e-01 : f32
    %59 = vector.broadcast %cst_22 : f32 to vector<1x128xf32>
    %60 = arith.mulf %58, %59 : vector<1x128xf32>
    %61 = arith.subf %56, %60 : vector<1x128xf32>
    %62 = tpu.concatenate %17, %28, %39, %50, %61 in 0 : vector<1x128xf32>, vector<1x128xf32>, vector<1x128xf32>, vector<1x128xf32>, vector<1x128xf32> -> vector<5x128xf32>
    %c0_23 = arith.constant 0 : index
    %c0_24 = arith.constant 0 : index
    %63 = vector.load %arg4[%c0_23, %c0_24] : memref<5x1xf32, #tpu.memory_space<vmem>>, vector<5x1xf32>
    %64 = arith.mulf %62, %62 : vector<5x128xf32>
    %cst_25 = arith.constant dense<0.000000e+00> : vector<5xf32>
    %65 = vector.multi_reduction <add>, %64, %cst_25 [1] : vector<5x128xf32> to vector<5xf32>
    %66 = vector.shape_cast %65 : vector<5xf32> to vector<5x1xf32>
    %67 = arith.addf %63, %66 : vector<5x1xf32>
    %c0_26 = arith.constant 0 : index
    %c0_27 = arith.constant 0 : index
    %68 = vector.load %arg4[%c0_26, %c0_27] : memref<5x1xf32, #tpu.memory_space<vmem>>, vector<5x1xf32>
    tpu.vector_store %arg4[%c0_26, %c0_27], %67 {strides = array<i32>} : memref<5x1xf32, #tpu.memory_space<vmem>>, vector<5x1xf32>,
    %c0_i32_28 = arith.constant 0 : i32
    %69 = arith.cmpi eq, %arg0, %c0_i32_28 : i32
    %70 = arith.extui %69 : i1 to i32
    %c0_i32_29 = arith.constant 0 : i32
    %71 = arith.cmpi ne, %70, %c0_i32_29 : i32
    scf.if %71 {
      %c0_30 = arith.constant 0 : index
      %c0_31 = arith.constant 0 : index
      %72 = vector.load %arg4[%c0_30, %c0_31] : memref<5x1xf32, #tpu.memory_space<vmem>>, vector<5x1xf32>
      %73 = math.sqrt %72 : vector<5x1xf32>
      %cst_32 = arith.constant dense<0.000000e+00> : vector<1xf32>
      %74 = vector.multi_reduction <add>, %73, %cst_32 [0] : vector<5x1xf32> to vector<1xf32>
      %75 = vector.shape_cast %74 : vector<1xf32> to vector<1x1xf32>
      %c0_33 = arith.constant 0 : index
      %c0_34 = arith.constant 0 : index
      %76 = vector.load %arg3[%c0_33, %c0_34] : memref<1x1xf32, #tpu.memory_space<vmem>>, vector<1x1xf32>
      tpu.vector_store %arg3[%c0_33, %c0_34], %75 {strides = array<i32>} : memref<1x1xf32, #tpu.memory_space<vmem>>, vector<1x1xf32>,
    } else {
    }
    return
  }
  func.func @transform_0(%arg0: i32) -> (i32, i32) {
    %c0_i32 = arith.constant 0 : i32
    %c0_i32_0 = arith.constant 0 : i32
    return %c0_i32, %arg0 : i32, i32
  }
  func.func @transform_1(%arg0: i32) -> (i32, i32) {
    %c0_i32 = arith.constant 0 : i32
    %c0_i32_0 = arith.constant 0 : i32
    return %c0_i32, %arg0 : i32, i32
  }
  func.func @transform_2(%arg0: i32) -> (i32, i32) {
    %c0_i32 = arith.constant 0 : i32
    %c0_i32_0 = arith.constant 0 : i32
    %c0_i32_1 = arith.constant 0 : i32
    return %c0_i32, %c0_i32_0 : i32, i32
  }
}

</mosaic_0001>

<llo_original>
// kernel: tpu_custom_call.1
$region0: #{tpu_custom_call.1}
  #allocation0 [shape = 'u32[]', space=smem, size = 0x4, offset = 0x4, fixed_abs, tag = 'smem constant byte address 0x4 - core index']
  #allocation1 [shape = 'u32[144,128]{1,0:T(1,128)}', space=vmem, size = 0x12000, scoped, tag = 'internal scratch']
  #allocation2 [shape = 'f32[5,1]{1,0:T(8,128)}', space=vmem, size = 0x1000, scoped, tag = 'scratch operand']
  %s0 = inlined_call_operand.hbm [shape: f32[16,128], index: 0, kind: input, shape index: {}]
  %s1 = inlined_call_operand.hbm [shape: f32[8,128], index: 1, kind: input, shape index: {}]
  %s2 = inlined_call_operand.hbm [shape: f32[1,1], index: 2, kind: output, shape index: {}]
  %s3 = sld [smem:[#allocation0]]
  $region34: #{tpu_custom_call.1} parent=0
    _
  %s5 = ssub.s32 1, %s3
  %s6 = scalar_select 0, %s5, %s3
  $region1: #{tpu_custom_call.1} parent=0
    #allocation3 [shape = 'u8[8192]{0}', space=vmem, size = 0x2000, scoped, tag = 'input window, operand 0, single buffered']
    #allocation4 [shape = 's32[1]{0}', space=sflag, size = 0x4, scoped, tag = 'scoped memory for tpu_custom_call.1']
    #allocation5 [shape = 's32[1]{0}', space=sflag, size = 0x4, scoped, tag = 'scoped memory for tpu_custom_call.1']
    #allocation6 [shape = 'u8[4096]{0}', space=vmem, size = 0x1000, scoped, tag = 'input window, operand 1, single buffered']
    #allocation7 [shape = 's32[1]{0}', space=sflag, size = 0x4, scoped, tag = 'scoped memory for tpu_custom_call.1']
    #allocation8 [shape = 'u8[512]{0}', space=vmem, size = 0x400, scoped, tag = 'output window, operand 0, single buffered']
    %7 = vsyncpa [#allocation4], 0
    %8 = vsyncpa [#allocation7], 0
    %9 = vsyncpa [#allocation5], 0
    // Predicated region
    $region2: #{tpu_custom_call.1} parent=1 // pred_check
      _
    $region3: #{tpu_custom_call.1} parent=1 // pred_check_branch
      %11 = sbr.rel (0) target = $region5
    $region4: #{tpu_custom_call.1} parent=1 // pred_region
      %s13 = ssub.s32 256, 256
      %14 = vsyncadd [#allocation4], %s13
      %s15 = sshll.u32 [#allocation3], 4
      %s16 = int_to_ptr.vmem [resolvable:$true] %s15
      %21 = dma.hbm_to_vmem [thread:$0]  %s0, 256, %s16, [#allocation4], 128, 128, 8
    $region5: #{tpu_custom_call.1} parent=1 // pred_fallthru
      _
    // Predicated region
    $region6: #{tpu_custom_call.1} parent=1 // pred_check
      _
    $region7: #{tpu_custom_call.1} parent=1 // pred_check_branch
      %23 = sbr.rel (0) target = $region9
    $region8: #{tpu_custom_call.1} parent=1 // pred_region
      %s25 = ssub.s32 128, 128
      %26 = vsyncadd [#allocation7], %s25
      %s28 = sshll.u32 [#allocation6], 4
      %s29 = int_to_ptr.vmem [resolvable:$true] %s28
      %31 = dma.hbm_to_vmem [thread:$0]  %s1, 128, %s29, [#allocation7]
    $region9: #{tpu_custom_call.1} parent=1 // pred_fallthru
      _
    // Predicated region
    $region10: #{tpu_custom_call.1} parent=1 // pred_check
      _
    $region11: #{tpu_custom_call.1} parent=1 // pred_check_branch
      %33 = sbr.rel (0) target = $region13
    $region12: #{tpu_custom_call.1} parent=1 // pred_region
      %34 = dma.done [#allocation4], 256
    $region13: #{tpu_custom_call.1} parent=1 // pred_fallthru
      _
    // Predicated region
    $region14: #{tpu_custom_call.1} parent=1 // pred_check
      _
    $region15: #{tpu_custom_call.1} parent=1 // pred_check_branch
      %36 = sbr.rel (0) target = $region17
    $region16: #{tpu_custom_call.1} parent=1 // pred_region
      %37 = dma.done [#allocation7], 128
    $region17: #{tpu_custom_call.1} parent=1 // pred_fallthru
      _
    %p38 = scmp.eq.s32.totalorder 0, 0
    // Predicated region
    $region18: #{tpu_custom_call.1} parent=1 // pred_check
      %p39 = pneg %p38
    $region19: #{tpu_custom_call.1} parent=1 // pred_check_branch
      %41 = sbr.rel (%p39) target = $region21
    $region20: #{tpu_custom_call.1} parent=1 // pred_region
      %vm42 = vcmask 4096
      %43 = vst.msk [vmem:[#allocation2] sm:$0x1f] %vm42, 0.0
    $region21: #{tpu_custom_call.1} parent=1 // pred_fallthru
      _
    %v44 = vld [vmem:[#allocation3] sm:$0xff]
    %v45 = vld [vmem:[#allocation3 + $0x8] sm:$0xff]
    %v46 = vld [vmem:[#allocation6] sm:$0xff]
    %v47 = vadd.f32 %v44, %v45
    %v48 = vrot.slane %v47, 4
    %v49 = vadd.f32 %v47, %v48
    %v50 = vrot.slane %v49, 2
    %v51 = vadd.f32 %v49, %v50
    %v52 = vrot.slane %v51, 1
    %v53 = vadd.f32 %v51, %v52
    %v54 = vmul.f32 %v53, 0.0625
    %v55 = vrot.slane %v46, 4
    %v56 = vadd.f32 %v46, %v55
    %v57 = vrot.slane %v56, 2
    %v58 = vadd.f32 %v56, %v57
    %v59 = vrot.slane %v58, 1
    %v60 = vadd.f32 %v58, %v59
    %v61 = vmul.f32 %v60, 0.125
    %v62 = vsub.f32 %v44, %v54
    %v63 = vsub.f32 %v45, %v54
    %v64 = vsub.f32 %v46, %v61
    %v65 = vsub.f32 %v54, %v61
    %v66 = vmul.f32 %v62, %v62
    %v67 = vmul.f32 %v63, %v63
    %v68 = vmul.f32 %v64, %v64
    %v69 = vadd.f32 %v66, %v67
    %v70 = vrot.slane %v69, 4
    %v71 = vadd.f32 %v69, %v70
    %v72 = vrot.slane %v71, 2
    %v73 = vadd.f32 %v71, %v72
    %v74 = vrot.slane %v73, 1
    %v75 = vadd.f32 %v73, %v74
    %v76 = vmul.f32 %v75, 0.0625
    %v77 = vrot.slane %v68, 4
    %v78 = vadd.f32 %v68, %v77
    %v79 = vrot.slane %v78, 2
    %v80 = vadd.f32 %v78, %v79
    %v81 = vrot.slane %v80, 1
    %v82 = vadd.f32 %v80, %v81
    %v83 = vmul.f32 %v82, 0.125
    %v84 = vsub.f32 %v76, %v83
    %v85 = vmul.f32 %v66, %v62
    %v86 = vmul.f32 %v67, %v63
    %v87 = vmul.f32 %v68, %v64
    %v88 = vadd.f32 %v85, %v86
    %v89 = vrot.slane %v88, 4
    %v90 = vadd.f32 %v88, %v89
    %v91 = vrot.slane %v90, 2
    %v92 = vadd.f32 %v90, %v91
    %v93 = vrot.slane %v92, 1
    %v94 = vadd.f32 %v92, %v93
    %v95 = vmul.f32 %v94, 0.0625
    %v96 = vrot.slane %v87, 4
    %v97 = vadd.f32 %v87, %v96
    %v98 = vrot.slane %v97, 2
    %v99 = vadd.f32 %v97, %v98
    %v100 = vrot.slane %v99, 1
    %v101 = vadd.f32 %v99, %v100
    %v102 = vmul.f32 %v101, 0.125
    %v103 = vsub.f32 %v95, %v102
    %v104 = vmul.f32 %v85, %v62
    %v105 = vmul.f32 %v86, %v63
    %v106 = vmul.f32 %v87, %v64
    %v107 = vadd.f32 %v104, %v105
    %v108 = vrot.slane %v107, 4
    %v109 = vadd.f32 %v107, %v108
    %v110 = vrot.slane %v109, 2
    %v111 = vadd.f32 %v109, %v110
    %v112 = vrot.slane %v111, 1
    %v113 = vadd.f32 %v111, %v112
    %v114 = vmul.f32 %v113, 0.0625
    %v115 = vrot.slane %v106, 4
    %v116 = vadd.f32 %v106, %v115
    %v117 = vrot.slane %v116, 2
    %v118 = vadd.f32 %v116, %v117
    %v119 = vrot.slane %v118, 1
    %v120 = vadd.f32 %v118, %v119
    %v121 = vmul.f32 %v120, 0.125
    %v122 = vsub.f32 %v114, %v121
    %v123 = vmul.f32 %v104, %v62
    %v124 = vmul.f32 %v105, %v63
    %v125 = vmul.f32 %v106, %v64
    %v126 = vadd.f32 %v123, %v124
    %v127 = vrot.slane %v126, 4
    %v128 = vadd.f32 %v126, %v127
    %v129 = vrot.slane %v128, 2
    %v130 = vadd.f32 %v128, %v129
    %v131 = vrot.slane %v130, 1
    %v132 = vadd.f32 %v130, %v131
    %v133 = vmul.f32 %v132, 0.0625
    %v134 = vrot.slane %v125, 4
    %v135 = vadd.f32 %v125, %v134
    %v136 = vrot.slane %v135, 2
    %v137 = vadd.f32 %v135, %v136
    %v138 = vrot.slane %v137, 1
    %v139 = vadd.f32 %v137, %v138
    %v140 = vmul.f32 %v139, 0.125
    %v141 = vsub.f32 %v133, %v140
    %vm142 = vcmask 1040384
    %v143 = vsel %vm142, %v65, %v84
    %vm144 = vcmask 1041408
    %v145 = vsel %vm144, %v143, %v103
    %vm146 = vcmask 1042432
    %v147 = vsel %vm146, %v145, %v122
    %vm148 = vcmask 1043456
    %v149 = vsel %vm148, %v147, %v141
    %v150 = vld [vmem:[#allocation2] sm:$0x1f]
    %v151 = vmul.f32 %v149, %v149
    %vm152 = vcmask 1044480
    %v153 = vsel %vm152, %v151, 0.0
    %154 = vadd.xlane.f32.xlu0 %v153
    %v155 = vpop.xlane.xlu0 %154
    %v156 = vadd.f32 %v150, %v155
    %vm157 = vcmask 4096
    %158 = vst.msk [vmem:[#allocation2] sm:$0x1f] %vm157, %v156
    // Predicated region
    $region22: #{tpu_custom_call.1} parent=1 // pred_check
      %p159 = pneg %p38
    $region23: #{tpu_custom_call.1} parent=1 // pred_check_branch
      %161 = sbr.rel (%p159) target = $region25
    $region24: #{tpu_custom_call.1} parent=1 // pred_region
      %v162 = vld [vmem:[#allocation2] sm:$0x1f]
      %v163 = vrsqrt.pop %v162
      %v164 = vmul.f32 %v162, %v163
      %vm165 = vcmp.eq.f32.partialorder %v162, inf
      %v166 = vsel %vm165, %v162, %v164
      %vm167 = vcmp.eq.f32.partialorder %v162, 0.0
      %v168 = vand.u32 %v162, 2147483648
      %v169 = vsel %vm167, %v168, %v166
      %v170 = vsel %vm157, %v169, 0.0
      %v171 = vrot.slane %v170, 4
      %v172 = vadd.f32 %v170, %v171
      %v173 = vrot.slane %v172, 2
      %v174 = vadd.f32 %v172, %v173
      %v175 = vrot.slane %v174, 1
      %v176 = vadd.f32 %v174, %v175
      %vm177 = vcmask 0
      %178 = vst.msk [vmem:[#allocation8] sm:$0x1] %vm177, %v176
    $region25: #{tpu_custom_call.1} parent=1 // pred_fallthru
      _
    // Predicated region
    $region26: #{tpu_custom_call.1} parent=1 // pred_check
      _
    $region27: #{tpu_custom_call.1} parent=1 // pred_check_branch
      %180 = sbr.rel (0) target = $region29
    $region28: #{tpu_custom_call.1} parent=1 // pred_region
      %s182 = ssub.s32 16, 16
      %183 = vsyncadd [#allocation5], %s182
      %s185 = sshll.u32 [#allocation8], 4
      %s186 = int_to_ptr.vmem [resolvable:$true] %s185
      %188 = dma.vmem_to_hbm [thread:$0]  %s186, 16, %s2, [#allocation5]
    $region29: #{tpu_custom_call.1} parent=1 // pred_fallthru
      _
    // Predicated region
    $region30: #{tpu_custom_call.1} parent=1 // pred_check
      _
    $region31: #{tpu_custom_call.1} parent=1 // pred_check_branch
      %190 = sbr.rel (0) target = $region33
    $region32: #{tpu_custom_call.1} parent=1 // pred_region
      %191 = dma.done [#allocation5], 16
    $region33: #{tpu_custom_call.1} parent=1 // pred_fallthru
      _
    %192 = vsyncpa [#allocation4], 1
    %193 = vsyncpa [#allocation7], 1
    %194 = vsyncpa [#allocation5], 1

</llo_original>
